<compile_context>
chip_gen: v5e
topology: v5e:2x2
jax: 0.10.0
libtpu: 0.0.40
codegen_flags: <defaults>
</compile_context>

<pallas_src>
import jax
import jax.numpy as jnp
from jax.experimental import pallas as pl
from jax.experimental.pallas import tpu as pltpu


def _round_up(n, m):
    return ((n + m - 1) // m) * m


def _sublane_multiple(dtype):
    # Rows per fully-packed vreg sublane group: f32 -> 8, bf16 -> 16, int8/fp8 -> 32.
    return max(8, 32 // jnp.dtype(dtype).itemsize)


def _pad_feature(d, mxu_align=256):
    # Feature dims must be lane-dense (multiple of 128).  Dims beyond 128 are aligned to
    # the 256-wide MXU of v6e/v7x (also a multiple of 128, so harmless on v5e).
    if d <= 128:
        return 128
    return _round_up(d, mxu_align)


def mlp_kernel(x_ref, w1_ref, b1_ref, w2_ref, b2_ref, w3_ref, b3_ref, o_ref):
    # fc1 (bf16 operands, f32 accumulate) + bias + ReLU in f32 (v5e has no bf16 VPU).
    h = jnp.dot(x_ref[...], w1_ref[...], preferred_element_type=jnp.float32)
    h = jnp.maximum(h + b1_ref[...], 0.0)
    # Dropout = identity (PyTorch eval semantics).
    # TODO(synk): training-mode dropout (pltpu.prng_seed + prng_random_bits mask + 1/(1-p) scale).
    h = jnp.dot(h.astype(w2_ref.dtype), w2_ref[...], preferred_element_type=jnp.float32)
    h = jnp.maximum(h + b2_ref[...], 0.0)
    h = jnp.dot(h.astype(w3_ref.dtype), w3_ref[...], preferred_element_type=jnp.float32)
    o_ref[...] = (h + b3_ref[...]).astype(o_ref.dtype)


def pad_mlp_params(w1, b1, w2, b2, w3, b3, *, compute_dtype=jnp.bfloat16):
    """Pad/cast parameters once (hoisted out of the per-call path).

    Weights are stored as (in_features, out_features) -- i.e. transposed relative to
    torch.nn.Linear.weight -- so the kernel computes x @ W + b.
    """
    D_in, D_h1 = w1.shape
    D_h2 = w2.shape[1]
    D_out = w3.shape[1]

    dims = dict(
        D_in=D_in, D_h1=D_h1, D_h2=D_h2, D_out=D_out,
        D_in_p=_pad_feature(D_in), D_h1_p=_pad_feature(D_h1),
        D_h2_p=_pad_feature(D_h2), D_out_p=_pad_feature(D_out),
    )

    def pad2(a, rows, cols, dtype):
        return jnp.pad(a, ((0, rows - a.shape[0]), (0, cols - a.shape[1]))).astype(dtype)

    return dict(
        w1=pad2(w1, dims["D_in_p"], dims["D_h1_p"], compute_dtype),
        w2=pad2(w2, dims["D_h1_p"], dims["D_h2_p"], compute_dtype),
        w3=pad2(w3, dims["D_h2_p"], dims["D_out_p"], compute_dtype),
        # Biases stay f32: the bias+ReLU epilogue runs in f32.
        b1=pad2(b1, 1, dims["D_h1_p"], jnp.float32),
        b2=pad2(b2, 1, dims["D_h2_p"], jnp.float32),
        b3=pad2(b3, 1, dims["D_out_p"], jnp.float32),
        compute_dtype=jnp.dtype(compute_dtype),
        dims=dims,
    )


def mlp_forward_padded(x, params, *, tb=256, out_dtype=None):
    """x: (B, D_in) f32; params from pad_mlp_params()."""
    dims = params["dims"]
    compute_dtype = params["compute_dtype"]
    out_dtype = jnp.dtype(out_dtype) if out_dtype is not None else compute_dtype

    B, D_in = x.shape
    assert D_in == dims["D_in"], "input feature dim mismatch"
    D_in_p, D_h1_p = dims["D_in_p"], dims["D_h1_p"]
    D_h2_p, D_out_p = dims["D_h2_p"], dims["D_out_p"]

    # Batch tile: dtype-aware sublane multiple (bf16 packs 16 rows per vreg), capped at tb.
    sub = _sublane_multiple(compute_dtype)
    TB = min(_round_up(tb, sub), _round_up(B, sub))
    B_p = _round_up(B, TB)

    # Only x is padded per call; weights/biases were prepared once.
    x_p = jnp.pad(x, ((0, B_p - B), (0, D_in_p - D_in))).astype(compute_dtype)

    grid = (B_p // TB,)

    # VMEM budget: single-buffered weights/biases + double-buffered x/out tiles + f32 temps.
    itemsize_c = compute_dtype.itemsize
    itemsize_o = out_dtype.itemsize
    w_bytes = (D_in_p * D_h1_p + D_h1_p * D_h2_p + D_h2_p * D_out_p) * itemsize_c
    b_bytes = (D_h1_p + D_h2_p + D_out_p) * 4
    x_tile_bytes = TB * D_in_p * itemsize_c
    o_tile_bytes = TB * D_out_p * itemsize_o
    h_bytes = TB * max(D_h1_p, D_h2_p) * 4
    vmem_needed = w_bytes + b_bytes + 2 * (x_tile_bytes + o_tile_bytes) + 2 * h_bytes
    vmem_limit = int(min(100 * 1024 * 1024, max(32 * 1024 * 1024, 2 * vmem_needed)))

    # Advisory cost estimate for XLA's scheduler.
    flops = 2 * B_p * (D_in_p * D_h1_p + D_h1_p * D_h2_p + D_h2_p * D_out_p)
    bytes_accessed = int(B_p * D_in_p * itemsize_c + w_bytes + b_bytes
                         + B_p * D_out_p * itemsize_o)

    resident = pl.Buffered(1)  # constant index_map => single-buffer the resident operands

    out_p = pl.pallas_call(
        mlp_kernel,
        out_shape=jax.ShapeDtypeStruct((B_p, D_out_p), out_dtype),
        grid=grid,
        in_specs=[
            pl.BlockSpec((TB, D_in_p), lambda i: (i, 0)),                               # x
            pl.BlockSpec((D_in_p, D_h1_p), lambda i: (0, 0), pipeline_mode=resident),   # w1
            pl.BlockSpec((1, D_h1_p), lambda i: (0, 0), pipeline_mode=resident),        # b1
            pl.BlockSpec((D_h1_p, D_h2_p), lambda i: (0, 0), pipeline_mode=resident),   # w2
            pl.BlockSpec((1, D_h2_p), lambda i: (0, 0), pipeline_mode=resident),        # b2
            pl.BlockSpec((D_h2_p, D_out_p), lambda i: (0, 0), pipeline_mode=resident),  # w3
            pl.BlockSpec((1, D_out_p), lambda i: (0, 0), pipeline_mode=resident),       # b3
        ],
        out_specs=pl.BlockSpec((TB, D_out_p), lambda i: (i, 0)),
        compiler_params=pltpu.CompilerParams(
            dimension_semantics=("parallel",),     # megacore sharding on v7x when grid > 1
            vmem_limit_bytes=vmem_limit,
        ),
        cost_estimate=pl.CostEstimate(
            flops=flops, transcendentals=0, bytes_accessed=bytes_accessed
        ),
    )(x_p, params["w1"], params["b1"], params["w2"], params["b2"], params["w3"], params["b3"])

    # Strip batch/output padding.
    return out_p[:B, :dims["D_out"]]


def mlp_forward(x, w1, b1, w2, b2, w3, b3, *, tb=256,
                compute_dtype=jnp.bfloat16, out_dtype=None):
    """Convenience wrapper: pads params per call.  Prefer pad_mlp_params + mlp_forward_padded
    when calling repeatedly with the same parameters."""
    params = pad_mlp_params(w1, b1, w2, b2, w3, b3, compute_dtype=compute_dtype)
    return mlp_forward_padded(x, params, tb=tb, out_dtype=out_dtype)


def mlp_reference_f32(x, w1, b1, w2, b2, w3, b3):
    h = jnp.maximum(x @ w1 + b1, 0.0)
    h = jnp.maximum(h @ w2 + b2, 0.0)
    return h @ w3 + b3


def mlp_reference_bf16(x, w1, b1, w2, b2, w3, b3, compute_dtype=jnp.bfloat16):
    cd = compute_dtype
    h = jnp.dot(x.astype(cd), w1.astype(cd), preferred_element_type=jnp.float32) + b1
    h = jnp.maximum(h, 0.0)
    h = jnp.dot(h.astype(cd), w2.astype(cd), preferred_element_type=jnp.float32) + b2
    h = jnp.maximum(h, 0.0)
    return jnp.dot(h.astype(cd), w3.astype(cd), preferred_element_type=jnp.float32) + b3


if __name__ == "__main__":
    # Small shapes consistent with the MLP classifier.
    batch = 8
    input_size = 32
    hidden_size = 32
    output_size = 8

    key = jax.random.PRNGKey(0)
    kx, k1, k2, k3, kb1, kb2, kb3 = jax.random.split(key, 7)

    x = jax.random.normal(kx, (batch, input_size), dtype=jnp.float32)

    # Deterministic parameter init (uniform ~ nn.Linear's default scale).
    def init_linear(kw, kb, fan_in, fan_out):
        bound = 1.0 / jnp.sqrt(fan_in)
        w = jax.random.uniform(kw, (fan_in, fan_out), minval=-bound, maxval=bound,
                               dtype=jnp.float32)
        b = jax.random.uniform(kb, (1, fan_out), minval=-bound, maxval=bound,
                               dtype=jnp.float32)
        return w, b

    w1, b1 = init_linear(k1, kb1, input_size, hidden_size)
    w2, b2 = init_linear(k2, kb2, hidden_size, hidden_size)
    w3, b3 = init_linear(k3, kb3, hidden_size, output_size)

    # Pad/cast parameters once (hoisted out of the per-call path), then run the kernel.
    params = pad_mlp_params(w1, b1, w2, b2, w3, b3)
    out = mlp_forward_padded(x, params)           # bf16 output by default
    out = jax.block_until_ready(out)

    assert out.shape == (batch, output_size)

    out_f32 = out.astype(jnp.float32)

    # Check against a bf16-operand / f32-accumulate reference (matches kernel math;
    # slack for the bf16 output cast).
    ref_bf16 = mlp_reference_bf16(x, w1, b1, w2, b2, w3, b3)
    assert jnp.allclose(out_f32, ref_bf16, atol=5e-2, rtol=5e-2), "mismatch vs bf16 reference"

    # Looser sanity check against the pure-f32 reference (bf16 operand/output rounding expected).
    ref_f32 = mlp_reference_f32(x, w1, b1, w2, b2, w3, b3)
    assert jnp.allclose(out_f32, ref_f32, atol=1e-1, rtol=1e-1), "mismatch vs f32 reference"

    print("KERNEL_OK")
</pallas_src>

<mosaic_0001>
module attributes {stable_mosaic.version = 11 : i64} {
  func.func @mlp_kernel(%arg0: i32, %arg1: memref<16x128xbf16, #tpu.memory_space<vmem>>, %arg2: memref<128x128xbf16, #tpu.memory_space<vmem>>, %arg3: memref<1x128xf32, #tpu.memory_space<vmem>>, %arg4: memref<128x128xbf16, #tpu.memory_space<vmem>>, %arg5: memref<1x128xf32, #tpu.memory_space<vmem>>, %arg6: memref<128x128xbf16, #tpu.memory_space<vmem>>, %arg7: memref<1x128xf32, #tpu.memory_space<vmem>>, %arg8: memref<16x128xbf16, #tpu.memory_space<vmem>>) attributes {dimension_semantics = [#tpu.dimension_semantics<parallel>], iteration_bounds = array<i64: 1>, scalar_prefetch = 0 : i64, scratch_operands = 0 : i64, tpu.core_type = #tpu.core_type<tc>, window_params = [{transform_indices = @transform_0, window_bounds = array<i64: 16, 128>}, {pipeline_mode = #tpu.pipeline_mode<synchronous>, transform_indices = @transform_1, window_bounds = array<i64: 128, 128>}, {pipeline_mode = #tpu.pipeline_mode<synchronous>, transform_indices = @transform_2, window_bounds = array<i64: 1, 128>}, {pipeline_mode = #tpu.pipeline_mode<synchronous>, transform_indices = @transform_3, window_bounds = array<i64: 128, 128>}, {pipeline_mode = #tpu.pipeline_mode<synchronous>, transform_indices = @transform_4, window_bounds = array<i64: 1, 128>}, {pipeline_mode = #tpu.pipeline_mode<synchronous>, transform_indices = @transform_5, window_bounds = array<i64: 128, 128>}, {pipeline_mode = #tpu.pipeline_mode<synchronous>, transform_indices = @transform_6, window_bounds = array<i64: 1, 128>}, {transform_indices = @transform_7, window_bounds = array<i64: 16, 128>}]} {
    %c0 = arith.constant 0 : index
    %c0_0 = arith.constant 0 : index
    %0 = vector.load %arg1[%c0, %c0_0] : memref<16x128xbf16, #tpu.memory_space<vmem>>, vector<16x128xbf16>
    %c0_1 = arith.constant 0 : index
    %c0_2 = arith.constant 0 : index
    %1 = vector.load %arg2[%c0_1, %c0_2] : memref<128x128xbf16, #tpu.memory_space<vmem>>, vector<128x128xbf16>
    %cst = arith.constant dense<0.000000e+00> : vector<16x128xf32>
    %2 = tpu.matmul %0, %1, %cst {dimension_numbers = #tpu.dot_dimension_numbers<[1], [0], [0], [1], [0, 0, 1, 1], [], []>} : vector<16x128xbf16>, vector<128x128xbf16>, vector<16x128xf32> -> vector<16x128xf32>
    %c0_3 = arith.constant 0 : index
    %c0_4 = arith.constant 0 : index
    %3 = vector.load %arg3[%c0_3, %c0_4] : memref<1x128xf32, #tpu.memory_space<vmem>>, vector<1x128xf32>
    %4 = vector.broadcast %3 : vector<1x128xf32> to vector<16x128xf32>
    %5 = arith.addf %2, %4 : vector<16x128xf32>
    %cst_5 = arith.constant 0.000000e+00 : f32
    %6 = vector.broadcast %cst_5 : f32 to vector<16x128xf32>
    %7 = arith.maximumf %5, %6 : vector<16x128xf32>
    %8 = arith.truncf %7 : vector<16x128xf32> to vector<16x128xbf16>
    %c0_6 = arith.constant 0 : index
    %c0_7 = arith.constant 0 : index
    %9 = vector.load %arg4[%c0_6, %c0_7] : memref<128x128xbf16, #tpu.memory_space<vmem>>, vector<128x128xbf16>
    %cst_8 = arith.constant dense<0.000000e+00> : vector<16x128xf32>
    %10 = tpu.matmul %8, %9, %cst_8 {dimension_numbers = #tpu.dot_dimension_numbers<[1], [0], [0], [1], [0, 0, 1, 1], [], []>} : vector<16x128xbf16>, vector<128x128xbf16>, vector<16x128xf32> -> vector<16x128xf32>
    %c0_9 = arith.constant 0 : index
    %c0_10 = arith.constant 0 : index
    %11 = vector.load %arg5[%c0_9, %c0_10] : memref<1x128xf32, #tpu.memory_space<vmem>>, vector<1x128xf32>
    %12 = vector.broadcast %11 : vector<1x128xf32> to vector<16x128xf32>
    %13 = arith.addf %10, %12 : vector<16x128xf32>
    %cst_11 = arith.constant 0.000000e+00 : f32
    %14 = vector.broadcast %cst_11 : f32 to vector<16x128xf32>
    %15 = arith.maximumf %13, %14 : vector<16x128xf32>
    %16 = arith.truncf %15 : vector<16x128xf32> to vector<16x128xbf16>
    %c0_12 = arith.constant 0 : index
    %c0_13 = arith.constant 0 : index
    %17 = vector.load %arg6[%c0_12, %c0_13] : memref<128x128xbf16, #tpu.memory_space<vmem>>, vector<128x128xbf16>
    %cst_14 = arith.constant dense<0.000000e+00> : vector<16x128xf32>
    %18 = tpu.matmul %16, %17, %cst_14 {dimension_numbers = #tpu.dot_dimension_numbers<[1], [0], [0], [1], [0, 0, 1, 1], [], []>} : vector<16x128xbf16>, vector<128x128xbf16>, vector<16x128xf32> -> vector<16x128xf32>
    %c0_15 = arith.constant 0 : index
    %c0_16 = arith.constant 0 : index
    %19 = vector.load %arg7[%c0_15, %c0_16] : memref<1x128xf32, #tpu.memory_space<vmem>>, vector<1x128xf32>
    %20 = vector.broadcast %19 : vector<1x128xf32> to vector<16x128xf32>
    %21 = arith.addf %18, %20 : vector<16x128xf32>
    %22 = arith.truncf %21 : vector<16x128xf32> to vector<16x128xbf16>
    %c0_17 = arith.constant 0 : index
    %c0_18 = arith.constant 0 : index
    %23 = vector.load %arg8[%c0_17, %c0_18] : memref<16x128xbf16, #tpu.memory_space<vmem>>, vector<16x128xbf16>
    tpu.vector_store %arg8[%c0_17, %c0_18], %22 {strides = array<i32>} : memref<16x128xbf16, #tpu.memory_space<vmem>>, vector<16x128xbf16>,
    return
  }
  func.func @transform_0(%arg0: i32) -> (i32, i32) {
    %c0_i32 = arith.constant 0 : i32
    %c0_i32_0 = arith.constant 0 : i32
    return %arg0, %c0_i32 : i32, i32
  }
  func.func @transform_1(%arg0: i32) -> (i32, i32) {
    %c0_i32 = arith.constant 0 : i32
    %c0_i32_0 = arith.constant 0 : i32
    %c0_i32_1 = arith.constant 0 : i32
    return %c0_i32, %c0_i32_0 : i32, i32
  }
  func.func @transform_2(%arg0: i32) -> (i32, i32) {
    %c0_i32 = arith.constant 0 : i32
    %c0_i32_0 = arith.constant 0 : i32
    %c0_i32_1 = arith.constant 0 : i32
    return %c0_i32, %c0_i32_0 : i32, i32
  }
  func.func @transform_3(%arg0: i32) -> (i32, i32) {
    %c0_i32 = arith.constant 0 : i32
    %c0_i32_0 = arith.constant 0 : i32
    %c0_i32_1 = arith.constant 0 : i32
    return %c0_i32, %c0_i32_0 : i32, i32
  }
  func.func @transform_4(%arg0: i32) -> (i32, i32) {
    %c0_i32 = arith.constant 0 : i32
    %c0_i32_0 = arith.constant 0 : i32
    %c0_i32_1 = arith.constant 0 : i32
    return %c0_i32, %c0_i32_0 : i32, i32
  }
  func.func @transform_5(%arg0: i32) -> (i32, i32) {
    %c0_i32 = arith.constant 0 : i32
    %c0_i32_0 = arith.constant 0 : i32
    %c0_i32_1 = arith.constant 0 : i32
    return %c0_i32, %c0_i32_0 : i32, i32
  }
  func.func @transform_6(%arg0: i32) -> (i32, i32) {
    %c0_i32 = arith.constant 0 : i32
    %c0_i32_0 = arith.constant 0 : i32
    %c0_i32_1 = arith.constant 0 : i32
    return %c0_i32, %c0_i32_0 : i32, i32
  }
  func.func @transform_7(%arg0: i32) -> (i32, i32) {
    %c0_i32 = arith.constant 0 : i32
    %c0_i32_0 = arith.constant 0 : i32
    return %arg0, %c0_i32 : i32, i32
  }
}

</mosaic_0001>

<llo_original>
// kernel: tpu_custom_call.1
$region0: #{tpu_custom_call.1}
  #allocation0 [shape = 'u32[]', space=smem, size = 0x4, offset = 0x4, fixed_abs, tag = 'smem constant byte address 0x4 - core index']
  #allocation1 [shape = 'u32[72,128]{1,0:T(1,128)}', space=vmem, size = 0x9000, scoped, tag = 'internal scratch']
  %s0 = inlined_call_operand.hbm [shape: bf16[16,128], index: 0, kind: input, shape index: {}]
  %s1 = inlined_call_operand.hbm [shape: bf16[128,128], index: 1, kind: input, shape index: {}]
  %s2 = inlined_call_operand.vmem [shape: f32[1,128], index: 2, kind: input, shape index: {}]
  %s3 = inlined_call_operand.hbm [shape: bf16[128,128], index: 3, kind: input, shape index: {}]
  %s4 = inlined_call_operand.vmem [shape: f32[1,128], index: 4, kind: input, shape index: {}]
  %s5 = inlined_call_operand.hbm [shape: bf16[128,128], index: 5, kind: input, shape index: {}]
  %s6 = inlined_call_operand.vmem [shape: f32[1,128], index: 6, kind: input, shape index: {}]
  %s7 = inlined_call_operand.hbm [shape: bf16[16,128], index: 7, kind: output, shape index: {}]
  %s8 = sld [smem:[#allocation0]]
  $region54: #{tpu_custom_call.1} parent=0
    _
  %s10 = ssub.s32 1, %s8
  %s11 = scalar_select 0, %s10, %s8
  $region1: #{tpu_custom_call.1} parent=0
    #allocation2 [shape = 'u8[4096]{0}', space=vmem, size = 0x1000, scoped, tag = 'input window, operand 0, single buffered']
    #allocation3 [shape = 's32[1]{0}', space=sflag, size = 0x4, scoped, tag = 'scoped memory for tpu_custom_call.1']
    #allocation4 [shape = 's32[1]{0}', space=sflag, size = 0x4, scoped, tag = 'scoped memory for tpu_custom_call.1']
    #allocation5 [shape = 'u8[32768]{0}', space=vmem, size = 0x8000, scoped, tag = 'input window, operand 1, single buffered']
    #allocation6 [shape = 's32[1]{0}', space=sflag, size = 0x4, scoped, tag = 'scoped memory for tpu_custom_call.1']
    #allocation7 [shape = 'u8[32768]{0}', space=vmem, size = 0x8000, scoped, tag = 'input window, operand 3, single buffered']
    #allocation8 [shape = 'u8[32768]{0}', space=vmem, size = 0x8000, scoped, tag = 'input window, operand 5, single buffered']
    #allocation9 [shape = 's32[1]{0}', space=sflag, size = 0x4, scoped, tag = 'scoped memory for tpu_custom_call.1']
    #allocation10 [shape = 'u8[4096]{0}', space=vmem, size = 0x1000, scoped, tag = 'output window, operand 0, single buffered']
    %12 = vsyncpa [#allocation3], 0
    %13 = vsyncpa [#allocation6], 0
    %14 = vsyncpa [#allocation9], 0
    %15 = vsyncpa [#allocation4], 0
    // Predicated region
    $region2: #{tpu_custom_call.1} parent=1 // pred_check
      _
    $region3: #{tpu_custom_call.1} parent=1 // pred_check_branch
      %17 = sbr.rel (0) target = $region5
    $region4: #{tpu_custom_call.1} parent=1 // pred_region
      %19 = vsyncadd [#allocation3], 0
      %s20 = sshll.u32 %s0, 4
      %s21 = int_to_ptr.hbm [resolvable:$true] %s20
      %s22 = sshll.u32 [#allocation2], 4
      %s23 = int_to_ptr.vmem [resolvable:$true] %s22
      %28 = dma.hbm_to_vmem [thread:$0]  %s21, 128, %s23, [#allocation3], 64, 64, 4
    $region5: #{tpu_custom_call.1} parent=1 // pred_fallthru
      _
    // Predicated region
    $region6: #{tpu_custom_call.1} parent=1 // pred_check
      _
    $region7: #{tpu_custom_call.1} parent=1 // pred_check_branch
      %30 = sbr.rel (0) target = $region9
    $region8: #{tpu_custom_call.1} parent=1 // pred_region
      %32 = vsyncadd [#allocation6], 0
      %s33 = sshll.u32 %s1, 4
      %s34 = int_to_ptr.hbm [resolvable:$true] %s33
      %s35 = sshll.u32 [#allocation5], 4
      %s36 = int_to_ptr.vmem [resolvable:$true] %s35
      %41 = dma.hbm_to_vmem [thread:$0]  %s34, 1024, %s36, [#allocation6], 64, 64, 4
    $region9: #{tpu_custom_call.1} parent=1 // pred_fallthru
      _
    // Predicated region
    $region10: #{tpu_custom_call.1} parent=1 // pred_check
      _
    $region11: #{tpu_custom_call.1} parent=1 // pred_check_branch
      %43 = sbr.rel (0) target = $region13
    $region12: #{tpu_custom_call.1} parent=1 // pred_region
      _
    $region13: #{tpu_custom_call.1} parent=1 // pred_fallthru
      _
    // Predicated region
    $region14: #{tpu_custom_call.1} parent=1 // pred_check
      _
    $region15: #{tpu_custom_call.1} parent=1 // pred_check_branch
      %45 = sbr.rel (0) target = $region17
    $region16: #{tpu_custom_call.1} parent=1 // pred_region
      %47 = vsyncadd [#allocation6], 0
      %s48 = sshll.u32 %s3, 4
      %s49 = int_to_ptr.hbm [resolvable:$true] %s48
      %s50 = sshll.u32 [#allocation7], 4
      %s51 = int_to_ptr.vmem [resolvable:$true] %s50
      %56 = dma.hbm_to_vmem [thread:$0]  %s49, 1024, %s51, [#allocation6], 64, 64, 4
    $region17: #{tpu_custom_call.1} parent=1 // pred_fallthru
      _
    // Predicated region
    $region18: #{tpu_custom_call.1} parent=1 // pred_check
      _
    $region19: #{tpu_custom_call.1} parent=1 // pred_check_branch
      %58 = sbr.rel (0) target = $region21
    $region20: #{tpu_custom_call.1} parent=1 // pred_region
      _
    $region21: #{tpu_custom_call.1} parent=1 // pred_fallthru
      _
    // Predicated region
    $region22: #{tpu_custom_call.1} parent=1 // pred_check
      _
    $region23: #{tpu_custom_call.1} parent=1 // pred_check_branch
      %60 = sbr.rel (0) target = $region25
    $region24: #{tpu_custom_call.1} parent=1 // pred_region
      %62 = vsyncadd [#allocation9], 0
      %s63 = sshll.u32 %s5, 4
      %s64 = int_to_ptr.hbm [resolvable:$true] %s63
      %s65 = sshll.u32 [#allocation8], 4
      %s66 = int_to_ptr.vmem [resolvable:$true] %s65
      %71 = dma.hbm_to_vmem [thread:$0]  %s64, 1024, %s66, [#allocation9], 64, 64, 4
    $region25: #{tpu_custom_call.1} parent=1 // pred_fallthru
      _
    // Predicated region
    $region26: #{tpu_custom_call.1} parent=1 // pred_check
      _
    $region27: #{tpu_custom_call.1} parent=1 // pred_check_branch
      %73 = sbr.rel (0) target = $region29
    $region28: #{tpu_custom_call.1} parent=1 // pred_region
      _
    $region29: #{tpu_custom_call.1} parent=1 // pred_fallthru
      _
    // Predicated region
    $region30: #{tpu_custom_call.1} parent=1 // pred_check
      _
    $region31: #{tpu_custom_call.1} parent=1 // pred_check_branch
      %75 = sbr.rel (0) target = $region33
    $region32: #{tpu_custom_call.1} parent=1 // pred_region
      %77 = dma.done [#allocation3], 128
    $region33: #{tpu_custom_call.1} parent=1 // pred_fallthru
      _
    // Predicated region
    $region34: #{tpu_custom_call.1} parent=1 // pred_check
      _
    $region35: #{tpu_custom_call.1} parent=1 // pred_check_branch
      %79 = sbr.rel (0) target = $region37
    $region36: #{tpu_custom_call.1} parent=1 // pred_region
      %81 = dma.done [#allocation6], 1024
    $region37: #{tpu_custom_call.1} parent=1 // pred_fallthru
      _
    // Predicated region
    $region38: #{tpu_custom_call.1} parent=1 // pred_check
      _
    $region39: #{tpu_custom_call.1} parent=1 // pred_check_branch
      %83 = sbr.rel (0) target = $region41
    $region40: #{tpu_custom_call.1} parent=1 // pred_region
      %85 = dma.done [#allocation6], 1024
    $region41: #{tpu_custom_call.1} parent=1 // pred_fallthru
      _
    // Predicated region
    $region42: #{tpu_custom_call.1} parent=1 // pred_check
      _
    $region43: #{tpu_custom_call.1} parent=1 // pred_check_branch
      %87 = sbr.rel (0) target = $region45
    $region44: #{tpu_custom_call.1} parent=1 // pred_region
      %89 = dma.done [#allocation9], 1024
    $region45: #{tpu_custom_call.1} parent=1 // pred_fallthru
      _
    %v90 = vld [vmem:[#allocation2] sm:$0xf]
    %v91 = vld [vmem:[#allocation2 + $0x4] sm:$0xf]
    %v92 = vld [vmem:[#allocation5] sm:$0xf]
    %v93 = vld [vmem:[#allocation5 + $0x4] sm:$0xf]
    %v94 = vld [vmem:[#allocation5 + $0x8] sm:$0xf]
    %v95 = vld [vmem:[#allocation5 + $0xc] sm:$0xf]
    %v96 = vld [vmem:[#allocation5 + $0x10] sm:$0xf]
    %v97 = vld [vmem:[#allocation5 + $0x14] sm:$0xf]
    %v98 = vld [vmem:[#allocation5 + $0x18] sm:$0xf]
    %v99 = vld [vmem:[#allocation5 + $0x1c] sm:$0xf]
    %v100 = vld [vmem:[#allocation5 + $0x20] sm:$0xf]
    %v101 = vld [vmem:[#allocation5 + $0x24] sm:$0xf]
    %v102 = vld [vmem:[#allocation5 + $0x28] sm:$0xf]
    %v103 = vld [vmem:[#allocation5 + $0x2c] sm:$0xf]
    %v104 = vld [vmem:[#allocation5 + $0x30] sm:$0xf]
    %v105 = vld [vmem:[#allocation5 + $0x34] sm:$0xf]
    %v106 = vld [vmem:[#allocation5 + $0x38] sm:$0xf]
    %v107 = vld [vmem:[#allocation5 + $0x3c] sm:$0xf]
    %v108 = vld [vmem:[%s2] sm:$0x1]
    %v110 = vperm.slane %v108, 0
    %v114 = vunpack.c.l.b16 %v90
    %v115 = vunpack.c.l.b16 %v91
    %v116 = vpack.c.b16 %v115, %v114
    %v134 = vunpack.c.l.b16 %v92
    %v135 = vunpack.c.l.b16 %v93
    %v136 = vunpack.c.l.b16 %v94
    %v137 = vunpack.c.l.b16 %v95
    %v138 = vunpack.c.l.b16 %v96
    %v139 = vunpack.c.l.b16 %v97
    %v140 = vunpack.c.l.b16 %v98
    %v141 = vunpack.c.l.b16 %v99
    %v142 = vunpack.c.l.b16 %v100
    %v143 = vunpack.c.l.b16 %v101
    %v144 = vunpack.c.l.b16 %v102
    %v145 = vunpack.c.l.b16 %v103
    %v146 = vunpack.c.l.b16 %v104
    %v147 = vunpack.c.l.b16 %v105
    %v148 = vunpack.c.l.b16 %v106
    %v149 = vunpack.c.l.b16 %v107
    %v150 = vpack.c.b16 %v135, %v134
    %v151 = vpack.c.b16 %v137, %v136
    %v152 = vpack.c.b16 %v139, %v138
    %v153 = vpack.c.b16 %v141, %v140
    %v154 = vpack.c.b16 %v143, %v142
    %v155 = vpack.c.b16 %v145, %v144
    %v156 = vpack.c.b16 %v147, %v146
    %v157 = vpack.c.b16 %v149, %v148
    %166 = vmatpush.bf16.msra.mxu0 %v157
    %167 = vmatpush.bf16.msra.mxu0 %v156
    %168 = vmatpush.bf16.msra.mxu0 %v155
    %169 = vmatpush.bf16.msra.mxu0 %v154
    %170 = vmatpush.bf16.msra.mxu0 %v153
    %171 = vmatpush.bf16.msra.mxu0 %v152
    %172 = vmatpush.bf16.msra.mxu0 %v151
    %173 = vmatpush.bf16.msra.mxu0 %v150
    %174 = vmatmul.bf16.gmra.mxu0 %v116
    %v175 = vpop.f32.mrf.mxu0
    %v176 = vadd.f32 %v110, %v175
    %v177 = vpop.f32.mrf.mxu0
    %v178 = vadd.f32 %v110, %v177
    %179 = vdwg.mxu0
    %v180 = vmax.f32 %v176, 0.0
    %v181 = vmax.f32 %v178, 0.0
    %v182 = vpack.c.bf16 %v181, %v180
    %v183 = vld [vmem:[#allocation7] sm:$0xf]
    %v184 = vld [vmem:[#allocation7 + $0x4] sm:$0xf]
    %v185 = vld [vmem:[#allocation7 + $0x8] sm:$0xf]
    %v186 = vld [vmem:[#allocation7 + $0xc] sm:$0xf]
    %v187 = vld [vmem:[#allocation7 + $0x10] sm:$0xf]
    %v188 = vld [vmem:[#allocation7 + $0x14] sm:$0xf]
    %v189 = vld [vmem:[#allocation7 + $0x18] sm:$0xf]
    %v190 = vld [vmem:[#allocation7 + $0x1c] sm:$0xf]
    %v191 = vld [vmem:[#allocation7 + $0x20] sm:$0xf]
    %v192 = vld [vmem:[#allocation7 + $0x24] sm:$0xf]
    %v193 = vld [vmem:[#allocation7 + $0x28] sm:$0xf]
    %v194 = vld [vmem:[#allocation7 + $0x2c] sm:$0xf]
    %v195 = vld [vmem:[#allocation7 + $0x30] sm:$0xf]
    %v196 = vld [vmem:[#allocation7 + $0x34] sm:$0xf]
    %v197 = vld [vmem:[#allocation7 + $0x38] sm:$0xf]
    %v198 = vld [vmem:[#allocation7 + $0x3c] sm:$0xf]
    %v199 = vld [vmem:[%s4] sm:$0x1]
    %v201 = vperm.slane %v199, 0
    %v219 = vunpack.c.l.b16 %v183
    %v220 = vunpack.c.l.b16 %v184
    %v221 = vunpack.c.l.b16 %v185
    %v222 = vunpack.c.l.b16 %v186
    %v223 = vunpack.c.l.b16 %v187
    %v224 = vunpack.c.l.b16 %v188
    %v225 = vunpack.c.l.b16 %v189
    %v226 = vunpack.c.l.b16 %v190
    %v227 = vunpack.c.l.b16 %v191
    %v228 = vunpack.c.l.b16 %v192
    %v229 = vunpack.c.l.b16 %v193
    %v230 = vunpack.c.l.b16 %v194
    %v231 = vunpack.c.l.b16 %v195
    %v232 = vunpack.c.l.b16 %v196
    %v233 = vunpack.c.l.b16 %v197
    %v234 = vunpack.c.l.b16 %v198
    %v235 = vpack.c.b16 %v220, %v219
    %v236 = vpack.c.b16 %v222, %v221
    %v237 = vpack.c.b16 %v224, %v223
    %v238 = vpack.c.b16 %v226, %v225
    %v239 = vpack.c.b16 %v228, %v227
    %v240 = vpack.c.b16 %v230, %v229
    %v241 = vpack.c.b16 %v232, %v231
    %v242 = vpack.c.b16 %v234, %v233
    %251 = vmatpush.bf16.msra.mxu0 %v242
    %252 = vmatpush.bf16.msra.mxu0 %v241
    %253 = vmatpush.bf16.msra.mxu0 %v240
    %254 = vmatpush.bf16.msra.mxu0 %v239
    %255 = vmatpush.bf16.msra.mxu0 %v238
    %256 = vmatpush.bf16.msra.mxu0 %v237
    %257 = vmatpush.bf16.msra.mxu0 %v236
    %258 = vmatpush.bf16.msra.mxu0 %v235
    %259 = vmatmul.bf16.gmra.mxu0 %v182
    %v260 = vpop.f32.mrf.mxu0
    %v261 = vadd.f32 %v201, %v260
    %v262 = vpop.f32.mrf.mxu0
    %v263 = vadd.f32 %v201, %v262
    %264 = vdwg.mxu0
    %v265 = vmax.f32 %v261, 0.0
    %v266 = vmax.f32 %v263, 0.0
    %v267 = vpack.c.bf16 %v266, %v265
    %v268 = vld [vmem:[#allocation8] sm:$0xf]
    %v269 = vld [vmem:[#allocation8 + $0x4] sm:$0xf]
    %v270 = vld [vmem:[#allocation8 + $0x8] sm:$0xf]
    %v271 = vld [vmem:[#allocation8 + $0xc] sm:$0xf]
    %v272 = vld [vmem:[#allocation8 + $0x10] sm:$0xf]
    %v273 = vld [vmem:[#allocation8 + $0x14] sm:$0xf]
    %v274 = vld [vmem:[#allocation8 + $0x18] sm:$0xf]
    %v275 = vld [vmem:[#allocation8 + $0x1c] sm:$0xf]
    %v276 = vld [vmem:[#allocation8 + $0x20] sm:$0xf]
    %v277 = vld [vmem:[#allocation8 + $0x24] sm:$0xf]
    %v278 = vld [vmem:[#allocation8 + $0x28] sm:$0xf]
    %v279 = vld [vmem:[#allocation8 + $0x2c] sm:$0xf]
    %v280 = vld [vmem:[#allocation8 + $0x30] sm:$0xf]
    %v281 = vld [vmem:[#allocation8 + $0x34] sm:$0xf]
    %v282 = vld [vmem:[#allocation8 + $0x38] sm:$0xf]
    %v283 = vld [vmem:[#allocation8 + $0x3c] sm:$0xf]
    %v284 = vld [vmem:[%s6] sm:$0x1]
    %v286 = vperm.slane %v284, 0
    %v304 = vunpack.c.l.b16 %v268
    %v305 = vunpack.c.l.b16 %v269
    %v306 = vunpack.c.l.b16 %v270
    %v307 = vunpack.c.l.b16 %v271
    %v308 = vunpack.c.l.b16 %v272
    %v309 = vunpack.c.l.b16 %v273
    %v310 = vunpack.c.l.b16 %v274
    %v311 = vunpack.c.l.b16 %v275
    %v312 = vunpack.c.l.b16 %v276
    %v313 = vunpack.c.l.b16 %v277
    %v314 = vunpack.c.l.b16 %v278
    %v315 = vunpack.c.l.b16 %v279
    %v316 = vunpack.c.l.b16 %v280
    %v317 = vunpack.c.l.b16 %v281
    %v318 = vunpack.c.l.b16 %v282
    %v319 = vunpack.c.l.b16 %v283
    %v320 = vpack.c.b16 %v305, %v304
    %v321 = vpack.c.b16 %v307, %v306
    %v322 = vpack.c.b16 %v309, %v308
    %v323 = vpack.c.b16 %v311, %v310
    %v324 = vpack.c.b16 %v313, %v312
    %v325 = vpack.c.b16 %v315, %v314
    %v326 = vpack.c.b16 %v317, %v316
    %v327 = vpack.c.b16 %v319, %v318
    %336 = vmatpush.bf16.msra.mxu0 %v327
    %337 = vmatpush.bf16.msra.mxu0 %v326
    %338 = vmatpush.bf16.msra.mxu0 %v325
    %339 = vmatpush.bf16.msra.mxu0 %v324
    %340 = vmatpush.bf16.msra.mxu0 %v323
    %341 = vmatpush.bf16.msra.mxu0 %v322
    %342 = vmatpush.bf16.msra.mxu0 %v321
    %343 = vmatpush.bf16.msra.mxu0 %v320
    %344 = vmatmul.bf16.gmra.mxu0 %v267
    %v345 = vpop.f32.mrf.mxu0
    %v346 = vadd.f32 %v286, %v345
    %v347 = vpop.f32.mrf.mxu0
    %v348 = vadd.f32 %v286, %v347
    %349 = vdwg.mxu0
    %v350 = vpack.c.bf16 %v346, %v346
    %v351 = vpack.c.bf16 %v348, %v348
    %352 = vst [vmem:[#allocation10] sm:$0xf] %v350
    %353 = vst [vmem:[#allocation10 + $0x4] sm:$0xf] %v351
    // Predicated region
    $region46: #{tpu_custom_call.1} parent=1 // pred_check
      _
    $region47: #{tpu_custom_call.1} parent=1 // pred_check_branch
      %355 = sbr.rel (0) target = $region49
    $region48: #{tpu_custom_call.1} parent=1 // pred_region
      %357 = vsyncadd [#allocation4], 0
      %s358 = sshll.u32 [#allocation10], 4
      %s359 = int_to_ptr.vmem [resolvable:$true] %s358
      %s360 = sshll.u32 %s7, 4
      %s361 = int_to_ptr.hbm [resolvable:$true] %s360
      %366 = dma.vmem_to_hbm [thread:$0]  %s359, 128, %s361, [#allocation4], 64, 64, 4
    $region49: #{tpu_custom_call.1} parent=1 // pred_fallthru
      _
    // Predicated region
    $region50: #{tpu_custom_call.1} parent=1 // pred_check
      _
    $region51: #{tpu_custom_call.1} parent=1 // pred_check_branch
      %368 = sbr.rel (0) target = $region53
    $region52: #{tpu_custom_call.1} parent=1 // pred_region
      %370 = dma.done [#allocation4], 128
    $region53: #{tpu_custom_call.1} parent=1 // pred_fallthru
      _
    %371 = vsyncpa [#allocation3], 1
    %372 = vsyncpa [#allocation6], 1
    %373 = vsyncpa [#allocation9], 1
    %374 = vsyncpa [#allocation4], 1

</llo_original>
